<compile_context>
chip_gen: v6e
topology: v6e:2x2x1
jax: 0.10.0
libtpu: 0.0.40
codegen_flags: <defaults>
</compile_context>

<pallas_src>
import functools

import jax
import jax.numpy as jnp
from jax.experimental import pallas as pl
from jax.experimental.pallas import tpu as pltpu


def _round_up(x, m):
    return ((x + m - 1) // m) * m


def _fused_head_kernel(*refs, training):
    # Layout (eval):     pooled, add, bw, bb, wf, wa, b, out
    # Layout (training): pooled, add, drop, bw, bb, wf, wa, b, out
    if training:
        (pooled_ref, add_ref, drop_ref,
         bw_ref, bb_ref, wf_ref, wa_ref, b_ref, out_ref) = refs
    else:
        (pooled_ref, add_ref,
         bw_ref, bb_ref, wf_ref, wa_ref, b_ref, out_ref) = refs
        drop_ref = None

    # pooled_ref : (BM, C)   f32   GAP'd image features (cast to bf16 here)
    # add_ref    : (BM, 1)   f32   add_variable column
    # drop_ref   : (BM, FP)  bf16  dropout keep*2 scale (training only)
    # bw_ref     : (C, FP)   bf16  backbone stand-in weight (zero-padded cols)
    # bb_ref     : (1, FP)   f32   backbone stand-in bias   (zero-padded cols)
    # wf_ref     : (FP, NP)  bf16  fc_add.weight[:, :1000].T (zero-padded)
    # wa_ref     : (1, NP)   f32   fc_add.weight[:, 1000:].T (zero-padded)
    # b_ref      : (1, NP)   f32   fc_add.bias (padded cols = -1e30)
    # out_ref    : (BM, NP)  f32   softmax output (padded cols -> 0)

    # Fused backbone stand-in Linear: (BM, C) @ (C, FP) + bias  (MXU, f32 acc)
    feat = jnp.dot(pooled_ref[...].astype(jnp.bfloat16), bw_ref[...],
                   preferred_element_type=jnp.float32) + bb_ref[...]

    h = jnp.maximum(feat, 0.0)                               # ReLU

    if training:
        # nn.Dropout(p=0.5) train mode: mask carries 0.0 or 2.0 per element.
        h = h * drop_ref[...].astype(jnp.float32)

    # Fused concat + Linear(1001 -> 10): padded rows/cols of wf are exactly 0,
    # so they contribute nothing; padded bias cols are -1e30 -> exp == 0.
    # TODO(synk): for very large BM on v7x, chunk the FP dim here to shrink the
    # live (BM, FP) f32 intermediate; unnecessary at BM <= 1024.
    logits = jnp.dot(h.astype(jnp.bfloat16), wf_ref[...],
                     preferred_element_type=jnp.float32)
    logits = logits + add_ref[...] * wa_ref[...] + b_ref[...]

    # Softmax(dim=1) over the padded 128-lane block (padded cols underflow to 0).
    m = jnp.max(logits, axis=1, keepdims=True)
    e = jnp.exp(logits - m)
    out_ref[...] = e / jnp.sum(e, axis=1, keepdims=True)


def _choose_bm(batch, block_b):
    # At least 2 grid steps when the batch allows it (v7x megacore sharding),
    # multiple of 8 sublanes, capped at block_b (bigger tiles amortize the
    # ~0.35us per-step overhead on v5e/v6e).
    bm = _round_up(max(1, -(-batch // 2)), 8)
    return max(8, min(block_b, bm))


def model_forward(x_img, add_variable, padded_params, *, training=False,
                  rng_key=None, block_b=1024):
    """Forward pass matching Model.forward(x, add_variable)."""
    # ---- backbone glue (plain JAX) ----
    # TODO(synk): the external `net` (torchvision resnet50) is not reproduced; a
    # deterministic GAP + Linear stand-in produces the same (B, 1000) feature
    # shape.  The Linear part of the stand-in IS fused into the kernel below.
    pooled = jnp.mean(x_img.astype(jnp.float32), axis=(2, 3))         # NCHW -> (B, C)
    B, C = pooled.shape
    add_col = add_variable.astype(jnp.float32).reshape(B, 1)

    bw_p = padded_params["bw"]
    bb_p = padded_params["bb"]
    wf_p = padded_params["wf"]
    wa_p = padded_params["wa"]
    b_p = padded_params["b"]
    F = padded_params["feat_dim"]                                      # 1000
    N = padded_params["out_dim"]                                       # 10
    FP = bw_p.shape[1]                                                 # 1024
    NP = b_p.shape[1]                                                  # 128
    assert bw_p.shape[0] == C, "padded params were built for a different C"

    BM = _choose_bm(B, block_b)
    grid = (pl.cdiv(B, BM),)

    # Streamed inputs: ragged last batch block is handled by Pallas (OOB rows
    # are never written back; all math is row-local).
    in_specs = [
        pl.BlockSpec((BM, C), lambda i: (i, 0)),      # pooled (full last dim)
        pl.BlockSpec((BM, 1), lambda i: (i, 0)),      # add column
    ]
    inputs = [pooled, add_col]

    if training:
        # TODO(synk): in-kernel pltpu.prng_* would avoid streaming this mask,
        # but it has no CPU/interpret lowering; mask is generated host-side.
        if rng_key is None:
            rng_key = jax.random.PRNGKey(0)
        keep = jax.random.bernoulli(rng_key, 0.5, (B, FP))
        drop_scale = (keep.astype(jnp.float32) * 2.0).astype(jnp.bfloat16)
        in_specs.append(pl.BlockSpec((BM, FP), lambda i: (i, 0)))
        inputs.append(drop_scale)

    # VMEM-resident (grid-invariant) weights; ~0.3 MiB total even when
    # double-buffered, so no explicit single-buffering is needed.
    in_specs += [
        pl.BlockSpec((C, FP), lambda i: (0, 0)),      # backbone W
        pl.BlockSpec((1, FP), lambda i: (0, 0)),      # backbone b
        pl.BlockSpec((FP, NP), lambda i: (0, 0)),     # w_feat
        pl.BlockSpec((1, NP), lambda i: (0, 0)),      # w_add
        pl.BlockSpec((1, NP), lambda i: (0, 0)),      # bias (-1e30 padded)
    ]
    inputs += [bw_p, bb_p, wf_p, wa_p, b_p]

    # Truthful cost estimate: real dims, weights counted once.
    streamed = pooled.size * 4 + add_col.size * 4 + B * NP * 4
    if training:
        streamed += B * FP * 2
    weight_bytes = (bw_p.size * 2 + bb_p.size * 4 + wf_p.size * 2 +
                    wa_p.size * 4 + b_p.size * 4)
    cost = pl.CostEstimate(
        flops=int(2 * B * C * F + 2 * B * (F + 1) * N),
        transcendentals=int(B * N),
        bytes_accessed=int(streamed + weight_bytes),
    )

    kernel = functools.partial(_fused_head_kernel, training=training)
    out_p = pl.pallas_call(
        kernel,
        out_shape=jax.ShapeDtypeStruct((B, NP), jnp.float32),
        grid=grid,
        in_specs=in_specs,
        out_specs=pl.BlockSpec((BM, NP), lambda i: (i, 0)),
        compiler_params=pltpu.CompilerParams(
            dimension_semantics=("parallel",)),
        cost_estimate=cost,
    )(*inputs)

    return out_p[:, :N]


def init_params(key, in_channels, feat_dim=1000, out_dim=10):
    """Deterministic parameter init (PyTorch nn.Linear default: U(-1/sqrt(fan_in), +))."""
    k_bb_w, k_bb_b, k_fc_w, k_fc_b = jax.random.split(key, 4)

    # synthetic backbone stand-in: Linear(in_channels -> 1000)
    kb = 1.0 / jnp.sqrt(in_channels)
    backbone_w = jax.random.uniform(k_bb_w, (in_channels, feat_dim),
                                    jnp.float32, -kb, kb)
    backbone_b = jax.random.uniform(k_bb_b, (feat_dim,), jnp.float32, -kb, kb)

    # fc_add: Linear(1001 -> 10), weight shape (10, 1001) in PyTorch convention
    kf = 1.0 / jnp.sqrt(feat_dim + 1)
    fc_w = jax.random.uniform(k_fc_w, (out_dim, feat_dim + 1), jnp.float32, -kf, kf)
    fc_b = jax.random.uniform(k_fc_b, (out_dim,), jnp.float32, -kf, kf)

    return {
        "backbone_w": backbone_w,                       # (C, 1000)
        "backbone_b": backbone_b,                       # (1000,)
        "w_feat": fc_w[:, :feat_dim].T,                 # (1000, 10)
        "w_add": fc_w[:, feat_dim:].T,                  # (1, 10)
        "b": fc_b.reshape(1, out_dim),                  # (1, 10)
    }


def prepare_padded_params(params):
    """Pad + cast the kernel weight operands ONCE (reused across forward calls)."""
    C, F = params["backbone_w"].shape
    N = params["b"].shape[1]
    FP = _round_up(F, 128)                                             # 1000 -> 1024
    NP = _round_up(N, 128)                                             # 10   -> 128

    bw = jnp.zeros((C, FP), jnp.bfloat16).at[:, :F].set(
        params["backbone_w"].astype(jnp.bfloat16))
    bb = jnp.zeros((1, FP), jnp.float32).at[:, :F].set(
        params["backbone_b"].reshape(1, F))
    wf = jnp.zeros((FP, NP), jnp.bfloat16).at[:F, :N].set(
        params["w_feat"].astype(jnp.bfloat16))
    wa = jnp.zeros((1, NP), jnp.float32).at[:, :N].set(params["w_add"])
    # Padded logit columns get -1e30 bias so exp() underflows to exactly 0.
    b = jnp.full((1, NP), -1e30, jnp.float32).at[:, :N].set(params["b"])

    return {"bw": bw, "bb": bb, "wf": wf, "wa": wa, "b": b,
            "feat_dim": F, "out_dim": N}


def _reference_forward_bf16(x_img, add_variable, params):
    """Pure-JAX reference mirroring the kernel's bf16 MXU operands (eval mode)."""
    pooled = jnp.mean(x_img.astype(jnp.float32), axis=(2, 3))
    feat = jnp.dot(pooled.astype(jnp.bfloat16),
                   params["backbone_w"].astype(jnp.bfloat16),
                   preferred_element_type=jnp.float32) + params["backbone_b"]
    h = jnp.maximum(feat, 0.0)
    logits = jnp.dot(h.astype(jnp.bfloat16),
                     params["w_feat"].astype(jnp.bfloat16),
                     preferred_element_type=jnp.float32)
    logits = logits + add_variable.reshape(-1, 1) * params["w_add"] + params["b"]
    return jax.nn.softmax(logits, axis=1)


if __name__ == "__main__":
    key = jax.random.PRNGKey(0)
    k_params, k_x, k_add, k_drop = jax.random.split(key, 4)

    B, C, H, W = 2, 4, 16, 16
    x = jax.random.normal(k_x, (B, C, H, W), jnp.float32)              # NCHW image
    add_variable = jax.random.normal(k_add, (B,), jnp.float32)

    params = init_params(k_params, in_channels=C)
    padded_params = prepare_padded_params(params)                      # once, reused

    # Eval mode (dropout = identity): must match the bf16-matched reference.
    out = model_forward(x, add_variable, padded_params, training=False)
    out = jax.block_until_ready(out)

    ref = _reference_forward_bf16(x, add_variable, params)
    assert out.shape == (B, 10)
    assert jnp.allclose(jnp.sum(out, axis=1), 1.0, atol=1e-5)
    assert jnp.allclose(out, ref, atol=1e-4, rtol=1e-3)

    # Training mode smoke test (dropout active): rows still sum to 1.
    out_tr = model_forward(x, add_variable, padded_params, training=True,
                           rng_key=k_drop)
    out_tr = jax.block_until_ready(out_tr)
    assert out_tr.shape == (B, 10)
    assert jnp.allclose(jnp.sum(out_tr, axis=1), 1.0, atol=1e-5)

    print("KERNEL_OK")
</pallas_src>

<mosaic_0001>
module attributes {stable_mosaic.version = 11 : i64} {
  func.func @_fused_head_kernel(%arg0: i32, %arg1: memref<8x4xf32, #tpu.memory_space<vmem>>, %arg2: memref<8x1xf32, #tpu.memory_space<vmem>>, %arg3: memref<4x1024xbf16, #tpu.memory_space<vmem>>, %arg4: memref<1x1024xf32, #tpu.memory_space<vmem>>, %arg5: memref<1024x128xbf16, #tpu.memory_space<vmem>>, %arg6: memref<1x128xf32, #tpu.memory_space<vmem>>, %arg7: memref<1x128xf32, #tpu.memory_space<vmem>>, %arg8: memref<8x128xf32, #tpu.memory_space<vmem>>) attributes {dimension_semantics = [#tpu.dimension_semantics<parallel>], iteration_bounds = array<i64: 1>, scalar_prefetch = 0 : i64, scratch_operands = 0 : i64, tpu.core_type = #tpu.core_type<tc>, window_params = [{transform_indices = @transform_0, window_bounds = array<i64: 8, 4>}, {transform_indices = @transform_1, window_bounds = array<i64: 8, 1>}, {pipeline_mode = #tpu.pipeline_mode<synchronous>, transform_indices = @transform_2, window_bounds = array<i64: 4, 1024>}, {pipeline_mode = #tpu.pipeline_mode<synchronous>, transform_indices = @transform_3, window_bounds = array<i64: 1, 1024>}, {pipeline_mode = #tpu.pipeline_mode<synchronous>, transform_indices = @transform_4, window_bounds = array<i64: 1024, 128>}, {pipeline_mode = #tpu.pipeline_mode<synchronous>, transform_indices = @transform_5, window_bounds = array<i64: 1, 128>}, {pipeline_mode = #tpu.pipeline_mode<synchronous>, transform_indices = @transform_6, window_bounds = array<i64: 1, 128>}, {transform_indices = @transform_7, window_bounds = array<i64: 8, 128>}]} {
    %c0 = arith.constant 0 : index
    %c0_0 = arith.constant 0 : index
    %0 = vector.load %arg1[%c0, %c0_0] : memref<8x4xf32, #tpu.memory_space<vmem>>, vector<8x4xf32>
    %1 = arith.truncf %0 : vector<8x4xf32> to vector<8x4xbf16>
    %c0_1 = arith.constant 0 : index
    %c0_2 = arith.constant 0 : index
    %2 = vector.load %arg3[%c0_1, %c0_2] : memref<4x1024xbf16, #tpu.memory_space<vmem>>, vector<4x1024xbf16>
    %cst = arith.constant dense<0.000000e+00> : vector<8x1024xf32>
    %3 = tpu.matmul %1, %2, %cst {dimension_numbers = #tpu.dot_dimension_numbers<[1], [0], [0], [1], [0, 0, 1, 1], [], []>} : vector<8x4xbf16>, vector<4x1024xbf16>, vector<8x1024xf32> -> vector<8x1024xf32>
    %c0_3 = arith.constant 0 : index
    %c0_4 = arith.constant 0 : index
    %4 = vector.load %arg4[%c0_3, %c0_4] : memref<1x1024xf32, #tpu.memory_space<vmem>>, vector<1x1024xf32>
    %5 = vector.broadcast %4 : vector<1x1024xf32> to vector<8x1024xf32>
    %6 = arith.addf %3, %5 : vector<8x1024xf32>
    %cst_5 = arith.constant 0.000000e+00 : f32
    %7 = vector.broadcast %cst_5 : f32 to vector<8x1024xf32>
    %8 = arith.maximumf %6, %7 : vector<8x1024xf32>
    %9 = arith.truncf %8 : vector<8x1024xf32> to vector<8x1024xbf16>
    %c0_6 = arith.constant 0 : index
    %c0_7 = arith.constant 0 : index
    %10 = vector.load %arg5[%c0_6, %c0_7] : memref<1024x128xbf16, #tpu.memory_space<vmem>>, vector<1024x128xbf16>
    %cst_8 = arith.constant dense<0.000000e+00> : vector<8x128xf32>
    %11 = tpu.matmul %9, %10, %cst_8 {dimension_numbers = #tpu.dot_dimension_numbers<[1], [0], [0], [1], [0, 0, 1, 1], [], []>} : vector<8x1024xbf16>, vector<1024x128xbf16>, vector<8x128xf32> -> vector<8x128xf32>
    %c0_9 = arith.constant 0 : index
    %c0_10 = arith.constant 0 : index
    %12 = vector.load %arg2[%c0_9, %c0_10] : memref<8x1xf32, #tpu.memory_space<vmem>>, vector<8x1xf32>
    %c0_11 = arith.constant 0 : index
    %c0_12 = arith.constant 0 : index
    %13 = vector.load %arg6[%c0_11, %c0_12] : memref<1x128xf32, #tpu.memory_space<vmem>>, vector<1x128xf32>
    %14 = vector.broadcast %12 : vector<8x1xf32> to vector<8x128xf32>
    %15 = vector.broadcast %13 : vector<1x128xf32> to vector<8x128xf32>
    %16 = arith.mulf %14, %15 : vector<8x128xf32>
    %17 = arith.addf %11, %16 : vector<8x128xf32>
    %c0_13 = arith.constant 0 : index
    %c0_14 = arith.constant 0 : index
    %18 = vector.load %arg7[%c0_13, %c0_14] : memref<1x128xf32, #tpu.memory_space<vmem>>, vector<1x128xf32>
    %19 = vector.broadcast %18 : vector<1x128xf32> to vector<8x128xf32>
    %20 = arith.addf %17, %19 : vector<8x128xf32>
    %cst_15 = arith.constant dense<0xFF800000> : vector<8xf32>
    %21 = vector.multi_reduction <maximumf>, %20, %cst_15 [1] : vector<8x128xf32> to vector<8xf32>
    %22 = vector.shape_cast %21 : vector<8xf32> to vector<8x1xf32>
    %23 = vector.broadcast %22 : vector<8x1xf32> to vector<8x128xf32>
    %24 = arith.subf %20, %23 : vector<8x128xf32>
    %25 = math.exp %24 : vector<8x128xf32>
    %cst_16 = arith.constant dense<0.000000e+00> : vector<8xf32>
    %26 = vector.multi_reduction <add>, %25, %cst_16 [1] : vector<8x128xf32> to vector<8xf32>
    %27 = vector.shape_cast %26 : vector<8xf32> to vector<8x1xf32>
    %28 = vector.broadcast %27 : vector<8x1xf32> to vector<8x128xf32>
    %29 = arith.divf %25, %28 : vector<8x128xf32>
    %c0_17 = arith.constant 0 : index
    %c0_18 = arith.constant 0 : index
    %30 = vector.load %arg8[%c0_17, %c0_18] : memref<8x128xf32, #tpu.memory_space<vmem>>, vector<8x128xf32>
    tpu.vector_store %arg8[%c0_17, %c0_18], %29 {strides = array<i32>} : memref<8x128xf32, #tpu.memory_space<vmem>>, vector<8x128xf32>,
    return
  }
  func.func @transform_0(%arg0: i32) -> (i32, i32) {
    %c0_i32 = arith.constant 0 : i32
    %c0_i32_0 = arith.constant 0 : i32
    return %arg0, %c0_i32 : i32, i32
  }
  func.func @transform_1(%arg0: i32) -> (i32, i32) {
    %c0_i32 = arith.constant 0 : i32
    %c0_i32_0 = arith.constant 0 : i32
    return %arg0, %c0_i32 : i32, i32
  }
  func.func @transform_2(%arg0: i32) -> (i32, i32) {
    %c0_i32 = arith.constant 0 : i32
    %c0_i32_0 = arith.constant 0 : i32
    %c0_i32_1 = arith.constant 0 : i32
    return %c0_i32, %c0_i32_0 : i32, i32
  }
  func.func @transform_3(%arg0: i32) -> (i32, i32) {
    %c0_i32 = arith.constant 0 : i32
    %c0_i32_0 = arith.constant 0 : i32
    %c0_i32_1 = arith.constant 0 : i32
    return %c0_i32, %c0_i32_0 : i32, i32
  }
  func.func @transform_4(%arg0: i32) -> (i32, i32) {
    %c0_i32 = arith.constant 0 : i32
    %c0_i32_0 = arith.constant 0 : i32
    %c0_i32_1 = arith.constant 0 : i32
    return %c0_i32, %c0_i32_0 : i32, i32
  }
  func.func @transform_5(%arg0: i32) -> (i32, i32) {
    %c0_i32 = arith.constant 0 : i32
    %c0_i32_0 = arith.constant 0 : i32
    %c0_i32_1 = arith.constant 0 : i32
    return %c0_i32, %c0_i32_0 : i32, i32
  }
  func.func @transform_6(%arg0: i32) -> (i32, i32) {
    %c0_i32 = arith.constant 0 : i32
    %c0_i32_0 = arith.constant 0 : i32
    %c0_i32_1 = arith.constant 0 : i32
    return %c0_i32, %c0_i32_0 : i32, i32
  }
  func.func @transform_7(%arg0: i32) -> (i32, i32) {
    %c0_i32 = arith.constant 0 : i32
    %c0_i32_0 = arith.constant 0 : i32
    return %arg0, %c0_i32 : i32, i32
  }
}

</mosaic_0001>

<llo_original>
// kernel: tpu_custom_call.1
$region0: #{tpu_custom_call.1}
  #allocation0 [shape = 'u32[]', space=smem, size = 0x4, offset = 0x4, fixed_abs, tag = 'smem constant byte address 0x4 - core index']
  #allocation1 [shape = 'u32[144,128]{1,0:T(1,128)}', space=vmem, size = 0x12000, scoped, tag = 'internal scratch']
  %s0 = inlined_call_operand.hbm [shape: f32[2,4], index: 0, kind: input, shape index: {}]
  %s1 = inlined_call_operand.vmem [shape: f32[2,1], index: 1, kind: input, shape index: {}]
  %s2 = inlined_call_operand.hbm [shape: bf16[4,1024], index: 2, kind: input, shape index: {}]
  %s3 = inlined_call_operand.vmem [shape: f32[1,1024], index: 3, kind: input, shape index: {}]
  %s4 = inlined_call_operand.hbm [shape: bf16[1024,128], index: 4, kind: input, shape index: {}]
  %s5 = inlined_call_operand.vmem [shape: f32[1,128], index: 5, kind: input, shape index: {}]
  %s6 = inlined_call_operand.vmem [shape: f32[1,128], index: 6, kind: input, shape index: {}]
  %s7 = inlined_call_operand.hbm [shape: f32[2,128], index: 7, kind: output, shape index: {}]
  %s8 = sld [smem:[#allocation0]]
  $region50: #{tpu_custom_call.1} parent=0
    _
  %s10 = ssub.s32 1, %s8
  %s11 = scalar_select 0, %s10, %s8
  $region1: #{tpu_custom_call.1} parent=0
    #allocation2 [shape = 'u8[4096]{0}', space=vmem, size = 0x1000, scoped, tag = 'input window, operand 0, single buffered']
    #allocation3 [shape = 's32[1]{0}', space=sflag, size = 0x4, scoped, tag = 'scoped memory for tpu_custom_call.1']
    #allocation4 [shape = 's32[1]{0}', space=sflag, size = 0x4, scoped, tag = 'scoped memory for tpu_custom_call.1']
    #allocation5 [shape = 'u8[8192]{0}', space=vmem, size = 0x2000, scoped, tag = 'input window, operand 2, single buffered']
    #allocation6 [shape = 's32[1]{0}', space=sflag, size = 0x4, scoped, tag = 'scoped memory for tpu_custom_call.1']
    #allocation7 [shape = 'u8[262144]{0}', space=vmem, size = 0x40000, scoped, tag = 'input window, operand 4, single buffered']
    #allocation8 [shape = 'u8[4096]{0}', space=vmem, size = 0x1000, scoped, tag = 'output window, operand 0, single buffered']
    %12 = vsyncpa [#allocation3], 0
    %13 = vsyncpa [#allocation6], 0
    %14 = vsyncpa [#allocation4], 0
    // Predicated region
    $region2: #{tpu_custom_call.1} parent=1 // pred_check
      _
    $region3: #{tpu_custom_call.1} parent=1 // pred_check_branch
      %16 = sbr.rel (0) target = $region5
    $region4: #{tpu_custom_call.1} parent=1 // pred_region
      %s18 = ssub.s32 128, 32
      %19 = vsyncadd [#allocation3], %s18
      %s20 = sshll.u32 [#allocation2], 4
      %s21 = int_to_ptr.vmem [resolvable:$true] %s20
      %26 = dma.hbm_to_vmem [thread:$0]  %s0, 32, %s21, [#allocation3], 32, 32, 2
    $region5: #{tpu_custom_call.1} parent=1 // pred_fallthru
      _
    // Predicated region
    $region6: #{tpu_custom_call.1} parent=1 // pred_check
      _
    $region7: #{tpu_custom_call.1} parent=1 // pred_check_branch
      %28 = sbr.rel (0) target = $region9
    $region8: #{tpu_custom_call.1} parent=1 // pred_region
      _
    $region9: #{tpu_custom_call.1} parent=1 // pred_fallthru
      _
    // Predicated region
    $region10: #{tpu_custom_call.1} parent=1 // pred_check
      _
    $region11: #{tpu_custom_call.1} parent=1 // pred_check_branch
      %30 = sbr.rel (0) target = $region13
    $region12: #{tpu_custom_call.1} parent=1 // pred_region
      %s32 = ssub.s32 256, 256
      %33 = vsyncadd [#allocation6], %s32
      %s35 = sshll.u32 [#allocation5], 4
      %s36 = int_to_ptr.vmem [resolvable:$true] %s35
      %38 = dma.hbm_to_vmem [thread:$0]  %s2, 256, %s36, [#allocation6]
    $region13: #{tpu_custom_call.1} parent=1 // pred_fallthru
      _
    // Predicated region
    $region14: #{tpu_custom_call.1} parent=1 // pred_check
      _
    $region15: #{tpu_custom_call.1} parent=1 // pred_check_branch
      %40 = sbr.rel (0) target = $region17
    $region16: #{tpu_custom_call.1} parent=1 // pred_region
      _
    $region17: #{tpu_custom_call.1} parent=1 // pred_fallthru
      _
    // Predicated region
    $region18: #{tpu_custom_call.1} parent=1 // pred_check
      _
    $region19: #{tpu_custom_call.1} parent=1 // pred_check_branch
      %42 = sbr.rel (0) target = $region21
    $region20: #{tpu_custom_call.1} parent=1 // pred_region
      %s44 = ssub.s32 8192, 8192
      %45 = vsyncadd [#allocation6], %s44
      %s46 = sshll.u32 [#allocation7], 4
      %s47 = int_to_ptr.vmem [resolvable:$true] %s46
      %52 = dma.hbm_to_vmem [thread:$0]  %s4, 8192, %s47, [#allocation6], 64, 64, 4
    $region21: #{tpu_custom_call.1} parent=1 // pred_fallthru
      _
    // Predicated region
    $region22: #{tpu_custom_call.1} parent=1 // pred_check
      _
    $region23: #{tpu_custom_call.1} parent=1 // pred_check_branch
      %54 = sbr.rel (0) target = $region25
    $region24: #{tpu_custom_call.1} parent=1 // pred_region
      _
    $region25: #{tpu_custom_call.1} parent=1 // pred_fallthru
      _
    // Predicated region
    $region26: #{tpu_custom_call.1} parent=1 // pred_check
      _
    $region27: #{tpu_custom_call.1} parent=1 // pred_check_branch
      %56 = sbr.rel (0) target = $region29
    $region28: #{tpu_custom_call.1} parent=1 // pred_region
      _
    $region29: #{tpu_custom_call.1} parent=1 // pred_fallthru
      _
    // Predicated region
    $region30: #{tpu_custom_call.1} parent=1 // pred_check
      _
    $region31: #{tpu_custom_call.1} parent=1 // pred_check_branch
      %58 = sbr.rel (0) target = $region33
    $region32: #{tpu_custom_call.1} parent=1 // pred_region
      %59 = dma.done [#allocation3], 128
    $region33: #{tpu_custom_call.1} parent=1 // pred_fallthru
      _
    // Predicated region
    $region34: #{tpu_custom_call.1} parent=1 // pred_check
      _
    $region35: #{tpu_custom_call.1} parent=1 // pred_check_branch
      %61 = sbr.rel (0) target = $region37
    $region36: #{tpu_custom_call.1} parent=1 // pred_region
      %62 = dma.done [#allocation6], 256
    $region37: #{tpu_custom_call.1} parent=1 // pred_fallthru
      _
    // Predicated region
    $region38: #{tpu_custom_call.1} parent=1 // pred_check
      _
    $region39: #{tpu_custom_call.1} parent=1 // pred_check_branch
      %64 = sbr.rel (0) target = $region41
    $region40: #{tpu_custom_call.1} parent=1 // pred_region
      %65 = dma.done [#allocation6], 8192
    $region41: #{tpu_custom_call.1} parent=1 // pred_fallthru
      _
    %v67 = vld [vmem:[#allocation2] sm:$0xff]
    %v68 = vpack.c.bf16 %v67, %v67
    %v69 = vld [vmem:[#allocation5] sm:$0xff]
    %v70 = vld [vmem:[#allocation5 + $0x8] sm:$0xff]
    %v71 = vld [vmem:[%s3] sm:$0xff]
    %v73 = vlaneseq
    %v74 = vshrl.u32 %v73, 7
    %v75 = vsub.s32 0, %v74
    %v76 = vrot.slane %v71, %v75
    %v77 = vlaneseq
    %v78 = vshrl.u32 %v77, 7
    %v79 = vsub.s32 1, %v78
    %v80 = vrot.slane %v71, %v79
    %v81 = vlaneseq
    %v82 = vshrl.u32 %v81, 7
    %v83 = vsub.s32 2, %v82
    %v84 = vrot.slane %v71, %v83
    %v85 = vlaneseq
    %v86 = vshrl.u32 %v85, 7
    %v87 = vsub.s32 3, %v86
    %v88 = vrot.slane %v71, %v87
    %v89 = vlaneseq
    %v90 = vshrl.u32 %v89, 7
    %v91 = vsub.s32 4, %v90
    %v92 = vrot.slane %v71, %v91
    %v93 = vlaneseq
    %v94 = vshrl.u32 %v93, 7
    %v95 = vsub.s32 5, %v94
    %v96 = vrot.slane %v71, %v95
    %v97 = vlaneseq
    %v98 = vshrl.u32 %v97, 7
    %v99 = vsub.s32 6, %v98
    %v100 = vrot.slane %v71, %v99
    %v101 = vlaneseq
    %v102 = vshrl.u32 %v101, 7
    %v103 = vsub.s32 7, %v102
    %v104 = vrot.slane %v71, %v103
    %v115 = vcombine.high %v69, %v69
    %v117 = vunpack.c.l.s4 1983009808
    %v118 = vunpack.c.0.s8 %v117
    %v119 = vlaneseq
    %v120 = vshrl.u32 %v119, 7
    %v121 = vsub.s32 %v118, %v120
    %v122 = vrot.slane %v69, %v121
    %v124 = vunpack.c.l.s4 1983009808
    %v125 = vunpack.c.0.s8 %v124
    %v126 = vlaneseq
    %v127 = vshrl.u32 %v126, 7
    %v128 = vsub.s32 %v125, %v127
    %v129 = vrot.slane %v115, %v128
    %v130 = vcombine.high %v122, %v122
    %v131 = vcombine.high %v129, %v129
    %v132 = vcombine.high %v70, %v70
    %v134 = vunpack.c.l.s4 1983009808
    %v135 = vunpack.c.0.s8 %v134
    %v136 = vlaneseq
    %v137 = vshrl.u32 %v136, 7
    %v138 = vsub.s32 %v135, %v137
    %v139 = vrot.slane %v70, %v138
    %v141 = vunpack.c.l.s4 1983009808
    %v142 = vunpack.c.0.s8 %v141
    %v143 = vlaneseq
    %v144 = vshrl.u32 %v143, 7
    %v145 = vsub.s32 %v142, %v144
    %v146 = vrot.slane %v132, %v145
    %v147 = vcombine.high %v139, %v139
    %v148 = vcombine.high %v146, %v146
    %vm149 = vcmask 31744
    %v151 = vsel %vm149, %v68, 0
    %vm153 = vcmask 1041408
    %v155 = vsel %vm153, %v122, 0
    %v158 = vsel %vm153, %v130, 0
    %v161 = vsel %vm153, %v129, 0
    %v164 = vsel %vm153, %v131, 0
    %v167 = vsel %vm153, %v139, 0
    %v170 = vsel %vm153, %v147, 0
    %v173 = vsel %vm153, %v146, 0
    %v176 = vsel %vm153, %v148, 0
    %178 = vmatprep.subr.bf16.mxu0 0
    %179 = vmatpush1.bf16.msra.mxu0 0
    %180 = vmatprep.subr.bf16.mxu0 0
    %181 = vmatpush1.bf16.msra.mxu0 0
    %182 = vmatprep.subr.bf16.mxu0 0
    %183 = vmatpush1.bf16.msra.mxu0 0
    %184 = vmatprep.subr.bf16.mxu0 0
    %185 = vmatpush1.bf16.msra.mxu0 0
    %186 = vmatprep.subr.bf16.mxu0 0
    %187 = vmatpush1.bf16.msra.mxu0 0
    %188 = vmatprep.subr.bf16.mxu0 0
    %189 = vmatpush1.bf16.msra.mxu0 0
    %190 = vmatprep.subr.bf16.mxu0 0
    %191 = vmatpush1.bf16.msra.mxu0 0
    %192 = vmatprep.subr.bf16.mxu0 %v158
    %193 = vmatpush1.bf16.msra.mxu0 %v155
    %194 = vmatprep.subr.bf16.mxu0 0
    %195 = vmatpush2.bf16.msra.mxu0 0
    %196 = vmatprep.subr.bf16.mxu0 0
    %197 = vmatpush2.bf16.msra.mxu0 0
    %198 = vmatprep.subr.bf16.mxu0 0
    %199 = vmatpush2.bf16.msra.mxu0 0
    %200 = vmatprep.subr.bf16.mxu0 0
    %201 = vmatpush2.bf16.msra.mxu0 0
    %202 = vmatprep.subr.bf16.mxu0 0
    %203 = vmatpush2.bf16.msra.mxu0 0
    %204 = vmatprep.subr.bf16.mxu0 0
    %205 = vmatpush2.bf16.msra.mxu0 0
    %206 = vmatprep.subr.bf16.mxu0 0
    %207 = vmatpush2.bf16.msra.mxu0 0
    %208 = vmatprep.subr.bf16.mxu0 0
    %209 = vmatpush2.bf16.msra.mxu0 0
    %210 = vmatprep.mubr.bf16.mxu0 0
    %211 = vmatmul.mubr.bf16.gmra.mxu0 %v151
    %v212 = vpop.f32.mrf.mxu0
    %v213 = vadd.f32 %v76, %v212
    %v214 = vpop.f32.mrf.mxu0
    %v215 = vadd.f32 %v80, %v214
    %v216 = vpop.f32.mrf.mxu0
    %v217 = vpop.f32.mrf.mxu0
    %218 = vdwg.mxu0
    %219 = vmatprep.subr.bf16.mxu0 0
    %220 = vmatpush1.bf16.msra.mxu0 0
    %221 = vmatprep.subr.bf16.mxu0 0
    %222 = vmatpush1.bf16.msra.mxu0 0
    %223 = vmatprep.subr.bf16.mxu0 0
    %224 = vmatpush1.bf16.msra.mxu0 0
    %225 = vmatprep.subr.bf16.mxu0 0
    %226 = vmatpush1.bf16.msra.mxu0 0
    %227 = vmatprep.subr.bf16.mxu0 0
    %228 = vmatpush1.bf16.msra.mxu0 0
    %229 = vmatprep.subr.bf16.mxu0 0
    %230 = vmatpush1.bf16.msra.mxu0 0
    %231 = vmatprep.subr.bf16.mxu0 0
    %232 = vmatpush1.bf16.msra.mxu0 0
    %233 = vmatprep.subr.bf16.mxu0 %v164
    %234 = vmatpush1.bf16.msra.mxu0 %v161
    %235 = vmatprep.subr.bf16.mxu0 0
    %236 = vmatpush2.bf16.msra.mxu0 0
    %237 = vmatprep.subr.bf16.mxu0 0
    %238 = vmatpush2.bf16.msra.mxu0 0
    %239 = vmatprep.subr.bf16.mxu0 0
    %240 = vmatpush2.bf16.msra.mxu0 0
    %241 = vmatprep.subr.bf16.mxu0 0
    %242 = vmatpush2.bf16.msra.mxu0 0
    %243 = vmatprep.subr.bf16.mxu0 0
    %244 = vmatpush2.bf16.msra.mxu0 0
    %245 = vmatprep.subr.bf16.mxu0 0
    %246 = vmatpush2.bf16.msra.mxu0 0
    %247 = vmatprep.subr.bf16.mxu0 0
    %248 = vmatpush2.bf16.msra.mxu0 0
    %249 = vmatprep.subr.bf16.mxu0 0
    %250 = vmatpush2.bf16.msra.mxu0 0
    %251 = vmatprep.mubr.bf16.mxu0 0
    %252 = vmatmul.mubr.bf16.gmra.mxu0 %v151
    %v253 = vpop.f32.mrf.mxu0
    %v254 = vadd.f32 %v84, %v253
    %v255 = vpop.f32.mrf.mxu0
    %v256 = vadd.f32 %v88, %v255
    %v257 = vpop.f32.mrf.mxu0
    %v258 = vpop.f32.mrf.mxu0
    %259 = vdwg.mxu0
    %260 = vmatprep.subr.bf16.mxu0 0
    %261 = vmatpush1.bf16.msra.mxu0 0
    %262 = vmatprep.subr.bf16.mxu0 0
    %263 = vmatpush1.bf16.msra.mxu0 0
    %264 = vmatprep.subr.bf16.mxu0 0
    %265 = vmatpush1.bf16.msra.mxu0 0
    %266 = vmatprep.subr.bf16.mxu0 0
    %267 = vmatpush1.bf16.msra.mxu0 0
    %268 = vmatprep.subr.bf16.mxu0 0
    %269 = vmatpush1.bf16.msra.mxu0 0
    %270 = vmatprep.subr.bf16.mxu0 0
    %271 = vmatpush1.bf16.msra.mxu0 0
    %272 = vmatprep.subr.bf16.mxu0 0
    %273 = vmatpush1.bf16.msra.mxu0 0
    %274 = vmatprep.subr.bf16.mxu0 %v170
    %275 = vmatpush1.bf16.msra.mxu0 %v167
    %276 = vmatprep.subr.bf16.mxu0 0
    %277 = vmatpush2.bf16.msra.mxu0 0
    %278 = vmatprep.subr.bf16.mxu0 0
    %279 = vmatpush2.bf16.msra.mxu0 0
    %280 = vmatprep.subr.bf16.mxu0 0
    %281 = vmatpush2.bf16.msra.mxu0 0
    %282 = vmatprep.subr.bf16.mxu0 0
    %283 = vmatpush2.bf16.msra.mxu0 0
    %284 = vmatprep.subr.bf16.mxu0 0
    %285 = vmatpush2.bf16.msra.mxu0 0
    %286 = vmatprep.subr.bf16.mxu0 0
    %287 = vmatpush2.bf16.msra.mxu0 0
    %288 = vmatprep.subr.bf16.mxu0 0
    %289 = vmatpush2.bf16.msra.mxu0 0
    %290 = vmatprep.subr.bf16.mxu0 0
    %291 = vmatpush2.bf16.msra.mxu0 0
    %292 = vmatprep.mubr.bf16.mxu0 0
    %293 = vmatmul.mubr.bf16.gmra.mxu0 %v151
    %v294 = vpop.f32.mrf.mxu0
    %v295 = vadd.f32 %v92, %v294
    %v296 = vpop.f32.mrf.mxu0
    %v297 = vadd.f32 %v96, %v296
    %v298 = vpop.f32.mrf.mxu0
    %v299 = vpop.f32.mrf.mxu0
    %300 = vdwg.mxu0
    %301 = vmatprep.subr.bf16.mxu0 0
    %302 = vmatpush1.bf16.msra.mxu0 0
    %303 = vmatprep.subr.bf16.mxu0 0
    %304 = vmatpush1.bf16.msra.mxu0 0
    %305 = vmatprep.subr.bf16.mxu0 0
    %306 = vmatpush1.bf16.msra.mxu0 0
    %307 = vmatprep.subr.bf16.mxu0 0
    %308 = vmatpush1.bf16.msra.mxu0 0
    %309 = vmatprep.subr.bf16.mxu0 0
    %310 = vmatpush1.bf16.msra.mxu0 0
    %311 = vmatprep.subr.bf16.mxu0 0
    %312 = vmatpush1.bf16.msra.mxu0 0
    %313 = vmatprep.subr.bf16.mxu0 0
    %314 = vmatpush1.bf16.msra.mxu0 0
    %315 = vmatprep.subr.bf16.mxu0 %v176
    %316 = vmatpush1.bf16.msra.mxu0 %v173
    %317 = vmatprep.subr.bf16.mxu0 0
    %318 = vmatpush2.bf16.msra.mxu0 0
    %319 = vmatprep.subr.bf16.mxu0 0
    %320 = vmatpush2.bf16.msra.mxu0 0
    %321 = vmatprep.subr.bf16.mxu0 0
    %322 = vmatpush2.bf16.msra.mxu0 0
    %323 = vmatprep.subr.bf16.mxu0 0
    %324 = vmatpush2.bf16.msra.mxu0 0
    %325 = vmatprep.subr.bf16.mxu0 0
    %326 = vmatpush2.bf16.msra.mxu0 0
    %327 = vmatprep.subr.bf16.mxu0 0
    %328 = vmatpush2.bf16.msra.mxu0 0
    %329 = vmatprep.subr.bf16.mxu0 0
    %330 = vmatpush2.bf16.msra.mxu0 0
    %331 = vmatprep.subr.bf16.mxu0 0
    %332 = vmatpush2.bf16.msra.mxu0 0
    %333 = vmatprep.mubr.bf16.mxu0 0
    %334 = vmatmul.mubr.bf16.gmra.mxu0 %v151
    %v335 = vpop.f32.mrf.mxu0
    %v336 = vadd.f32 %v100, %v335
    %v337 = vpop.f32.mrf.mxu0
    %v338 = vadd.f32 %v104, %v337
    %v339 = vpop.f32.mrf.mxu0
    %v340 = vpop.f32.mrf.mxu0
    %341 = vdwg.mxu0
    %v342 = vmax.f32 %v213, 0.0
    %v343 = vmax.f32 %v215, 0.0
    %v344 = vmax.f32 %v254, 0.0
    %v345 = vmax.f32 %v256, 0.0
    %v346 = vmax.f32 %v295, 0.0
    %v347 = vmax.f32 %v297, 0.0
    %v348 = vmax.f32 %v336, 0.0
    %v349 = vmax.f32 %v338, 0.0
    %v350 = vpack.c.bf16 %v342, %v342
    %v351 = vpack.c.bf16 %v343, %v343
    %v352 = vpack.c.bf16 %v344, %v344
    %v353 = vpack.c.bf16 %v345, %v345
    %v354 = vpack.c.bf16 %v346, %v346
    %v355 = vpack.c.bf16 %v347, %v347
    %v356 = vpack.c.bf16 %v348, %v348
    %v357 = vpack.c.bf16 %v349, %v349
    %v358 = vld [vmem:[#allocation7] sm:$0xf]
    %v359 = vld [vmem:[#allocation7 + $0x4] sm:$0xf]
    %v360 = vld [vmem:[#allocation7 + $0x8] sm:$0xf]
    %v361 = vld [vmem:[#allocation7 + $0xc] sm:$0xf]
    %v362 = vld [vmem:[#allocation7 + $0x10] sm:$0xf]
    %v363 = vld [vmem:[#allocation7 + $0x14] sm:$0xf]
    %v364 = vld [vmem:[#allocation7 + $0x18] sm:$0xf]
    %v365 = vld [vmem:[#allocation7 + $0x1c] sm:$0xf]
    %v366 = vld [vmem:[#allocation7 + $0x20] sm:$0xf]
    %v367 = vld [vmem:[#allocation7 + $0x24] sm:$0xf]
    %v368 = vld [vmem:[#allocation7 + $0x28] sm:$0xf]
    %v369 = vld [vmem:[#allocation7 + $0x2c] sm:$0xf]
    %v370 = vld [vmem:[#allocation7 + $0x30] sm:$0xf]
    %v371 = vld [vmem:[#allocation7 + $0x34] sm:$0xf]
    %v372 = vld [vmem:[#allocation7 + $0x38] sm:$0xf]
    %v373 = vld [vmem:[#allocation7 + $0x3c] sm:$0xf]
    %v374 = vld [vmem:[#allocation7 + $0x40] sm:$0xf]
    %v375 = vld [vmem:[#allocation7 + $0x44] sm:$0xf]
    %v376 = vld [vmem:[#allocation7 + $0x48] sm:$0xf]
    %v377 = vld [vmem:[#allocation7 + $0x4c] sm:$0xf]
    %v378 = vld [vmem:[#allocation7 + $0x50] sm:$0xf]
    %v379 = vld [vmem:[#allocation7 + $0x54] sm:$0xf]
    %v380 = vld [vmem:[#allocation7 + $0x58] sm:$0xf]
    %v381 = vld [vmem:[#allocation7 + $0x5c] sm:$0xf]
    %v382 = vld [vmem:[#allocation7 + $0x60] sm:$0xf]
    %v383 = vld [vmem:[#allocation7 + $0x64] sm:$0xf]
    %v384 = vld [vmem:[#allocation7 + $0x68] sm:$0xf]
    %v385 = vld [vmem:[#allocation7 + $0x6c] sm:$0xf]
    %v386 = vld [vmem:[#allocation7 + $0x70] sm:$0xf]
    %v387 = vld [vmem:[#allocation7 + $0x74] sm:$0xf]
    %v388 = vld [vmem:[#allocation7 + $0x78] sm:$0xf]
    %v389 = vld [vmem:[#allocation7 + $0x7c] sm:$0xf]
    %v390 = vld [vmem:[#allocation7 + $0x80] sm:$0xf]
    %v391 = vld [vmem:[#allocation7 + $0x84] sm:$0xf]
    %v392 = vld [vmem:[#allocation7 + $0x88] sm:$0xf]
    %v393 = vld [vmem:[#allocation7 + $0x8c] sm:$0xf]
    %v394 = vld [vmem:[#allocation7 + $0x90] sm:$0xf]
    %v395 = vld [vmem:[#allocation7 + $0x94] sm:$0xf]
    %v396 = vld [vmem:[#allocation7 + $0x98] sm:$0xf]
    %v397 = vld [vmem:[#allocation7 + $0x9c] sm:$0xf]
    %v398 = vld [vmem:[#allocation7 + $0xa0] sm:$0xf]
    %v399 = vld [vmem:[#allocation7 + $0xa4] sm:$0xf]
    %v400 = vld [vmem:[#allocation7 + $0xa8] sm:$0xf]
    %v401 = vld [vmem:[#allocation7 + $0xac] sm:$0xf]
    %v402 = vld [vmem:[#allocation7 + $0xb0] sm:$0xf]
    %v403 = vld [vmem:[#allocation7 + $0xb4] sm:$0xf]
    %v404 = vld [vmem:[#allocation7 + $0xb8] sm:$0xf]
    %v405 = vld [vmem:[#allocation7 + $0xbc] sm:$0xf]
    %v406 = vld [vmem:[#allocation7 + $0xc0] sm:$0xf]
    %v407 = vld [vmem:[#allocation7 + $0xc4] sm:$0xf]
    %v408 = vld [vmem:[#allocation7 + $0xc8] sm:$0xf]
    %v409 = vld [vmem:[#allocation7 + $0xcc] sm:$0xf]
    %v410 = vld [vmem:[#allocation7 + $0xd0] sm:$0xf]
    %v411 = vld [vmem:[#allocation7 + $0xd4] sm:$0xf]
    %v412 = vld [vmem:[#allocation7 + $0xd8] sm:$0xf]
    %v413 = vld [vmem:[#allocation7 + $0xdc] sm:$0xf]
    %v414 = vld [vmem:[#allocation7 + $0xe0] sm:$0xf]
    %v415 = vld [vmem:[#allocation7 + $0xe4] sm:$0xf]
    %v416 = vld [vmem:[#allocation7 + $0xe8] sm:$0xf]
    %v417 = vld [vmem:[#allocation7 + $0xec] sm:$0xf]
    %v418 = vld [vmem:[#allocation7 + $0xf0] sm:$0xf]
    %v419 = vld [vmem:[#allocation7 + $0xf4] sm:$0xf]
    %v420 = vld [vmem:[#allocation7 + $0xf8] sm:$0xf]
    %v421 = vld [vmem:[#allocation7 + $0xfc] sm:$0xf]
    %v422 = vld [vmem:[#allocation7 + $0x100] sm:$0xf]
    %v423 = vld [vmem:[#allocation7 + $0x104] sm:$0xf]
    %v424 = vld [vmem:[#allocation7 + $0x108] sm:$0xf]
    %v425 = vld [vmem:[#allocation7 + $0x10c] sm:$0xf]
    %v426 = vld [vmem:[#allocation7 + $0x110] sm:$0xf]
    %v427 = vld [vmem:[#allocation7 + $0x114] sm:$0xf]
    %v428 = vld [vmem:[#allocation7 + $0x118] sm:$0xf]
    %v429 = vld [vmem:[#allocation7 + $0x11c] sm:$0xf]
    %v430 = vld [vmem:[#allocation7 + $0x120] sm:$0xf]
    %v431 = vld [vmem:[#allocation7 + $0x124] sm:$0xf]
    %v432 = vld [vmem:[#allocation7 + $0x128] sm:$0xf]
    %v433 = vld [vmem:[#allocation7 + $0x12c] sm:$0xf]
    %v434 = vld [vmem:[#allocation7 + $0x130] sm:$0xf]
    %v435 = vld [vmem:[#allocation7 + $0x134] sm:$0xf]
    %v436 = vld [vmem:[#allocation7 + $0x138] sm:$0xf]
    %v437 = vld [vmem:[#allocation7 + $0x13c] sm:$0xf]
    %v438 = vld [vmem:[#allocation7 + $0x140] sm:$0xf]
    %v439 = vld [vmem:[#allocation7 + $0x144] sm:$0xf]
    %v440 = vld [vmem:[#allocation7 + $0x148] sm:$0xf]
    %v441 = vld [vmem:[#allocation7 + $0x14c] sm:$0xf]
    %v442 = vld [vmem:[#allocation7 + $0x150] sm:$0xf]
    %v443 = vld [vmem:[#allocation7 + $0x154] sm:$0xf]
    %v444 = vld [vmem:[#allocation7 + $0x158] sm:$0xf]
    %v445 = vld [vmem:[#allocation7 + $0x15c] sm:$0xf]
    %v446 = vld [vmem:[#allocation7 + $0x160] sm:$0xf]
    %v447 = vld [vmem:[#allocation7 + $0x164] sm:$0xf]
    %v448 = vld [vmem:[#allocation7 + $0x168] sm:$0xf]
    %v449 = vld [vmem:[#allocation7 + $0x16c] sm:$0xf]
    %v450 = vld [vmem:[#allocation7 + $0x170] sm:$0xf]
    %v451 = vld [vmem:[#allocation7 + $0x174] sm:$0xf]
    %v452 = vld [vmem:[#allocation7 + $0x178] sm:$0xf]
    %v453 = vld [vmem:[#allocation7 + $0x17c] sm:$0xf]
    %v454 = vld [vmem:[#allocation7 + $0x180] sm:$0xf]
    %v455 = vld [vmem:[#allocation7 + $0x184] sm:$0xf]
    %v456 = vld [vmem:[#allocation7 + $0x188] sm:$0xf]
    %v457 = vld [vmem:[#allocation7 + $0x18c] sm:$0xf]
    %v458 = vld [vmem:[#allocation7 + $0x190] sm:$0xf]
    %v459 = vld [vmem:[#allocation7 + $0x194] sm:$0xf]
    %v460 = vld [vmem:[#allocation7 + $0x198] sm:$0xf]
    %v461 = vld [vmem:[#allocation7 + $0x19c] sm:$0xf]
    %v462 = vld [vmem:[#allocation7 + $0x1a0] sm:$0xf]
    %v463 = vld [vmem:[#allocation7 + $0x1a4] sm:$0xf]
    %v464 = vld [vmem:[#allocation7 + $0x1a8] sm:$0xf]
    %v465 = vld [vmem:[#allocation7 + $0x1ac] sm:$0xf]
    %v466 = vld [vmem:[#allocation7 + $0x1b0] sm:$0xf]
    %v467 = vld [vmem:[#allocation7 + $0x1b4] sm:$0xf]
    %v468 = vld [vmem:[#allocation7 + $0x1b8] sm:$0xf]
    %v469 = vld [vmem:[#allocation7 + $0x1bc] sm:$0xf]
    %v470 = vld [vmem:[#allocation7 + $0x1c0] sm:$0xf]
    %v471 = vld [vmem:[#allocation7 + $0x1c4] sm:$0xf]
    %v472 = vld [vmem:[#allocation7 + $0x1c8] sm:$0xf]
    %v473 = vld [vmem:[#allocation7 + $0x1cc] sm:$0xf]
    %v474 = vld [vmem:[#allocation7 + $0x1d0] sm:$0xf]
    %v475 = vld [vmem:[#allocation7 + $0x1d4] sm:$0xf]
    %v476 = vld [vmem:[#allocation7 + $0x1d8] sm:$0xf]
    %v477 = vld [vmem:[#allocation7 + $0x1dc] sm:$0xf]
    %v478 = vld [vmem:[#allocation7 + $0x1e0] sm:$0xf]
    %v479 = vld [vmem:[#allocation7 + $0x1e4] sm:$0xf]
    %v480 = vld [vmem:[#allocation7 + $0x1e8] sm:$0xf]
    %v481 = vld [vmem:[#allocation7 + $0x1ec] sm:$0xf]
    %v482 = vld [vmem:[#allocation7 + $0x1f0] sm:$0xf]
    %v483 = vld [vmem:[#allocation7 + $0x1f4] sm:$0xf]
    %v484 = vld [vmem:[#allocation7 + $0x1f8] sm:$0xf]
    %v485 = vld [vmem:[#allocation7 + $0x1fc] sm:$0xf]
    %v486 = vld [vmem:[%s1] sm:$0xff]
    %v487 = vld [vmem:[%s5] sm:$0x1]
    %489 = vset.pattern.permute.xlu0 0
    %490 = vperm.xlu0 %489, %v486
    %v491 = vpop.permute.xlu0 %490
    %v494 = vlaneseq
    %v495 = vshrl.u32 %v494, 7
    %v496 = vsub.s32 0, %v495
    %v497 = vrot.slane %v487, %v496
    %v499 = vmul.f32 %v491, %v497
    %v628 = vunpack.c.l.b16 %v358
    %v629 = vunpack.c.l.b16 %v359
    %v630 = vunpack.c.l.b16 %v360
    %v631 = vunpack.c.l.b16 %v361
    %v632 = vunpack.c.l.b16 %v362
    %v633 = vunpack.c.l.b16 %v363
    %v634 = vunpack.c.l.b16 %v364
    %v635 = vunpack.c.l.b16 %v365
    %v636 = vunpack.c.l.b16 %v366
    %v637 = vunpack.c.l.b16 %v367
    %v638 = vunpack.c.l.b16 %v368
    %v639 = vunpack.c.l.b16 %v369
    %v640 = vunpack.c.l.b16 %v370
    %v641 = vunpack.c.l.b16 %v371
    %v642 = vunpack.c.l.b16 %v372
    %v643 = vunpack.c.l.b16 %v373
    %v644 = vunpack.c.l.b16 %v374
    %v645 = vunpack.c.l.b16 %v375
    %v646 = vunpack.c.l.b16 %v376
    %v647 = vunpack.c.l.b16 %v377
    %v648 = vunpack.c.l.b16 %v378
    %v649 = vunpack.c.l.b16 %v379
    %v650 = vunpack.c.l.b16 %v380
    %v651 = vunpack.c.l.b16 %v381
    %v652 = vunpack.c.l.b16 %v382
    %v653 = vunpack.c.l.b16 %v383
    %v654 = vunpack.c.l.b16 %v384
    %v655 = vunpack.c.l.b16 %v385
    %v656 = vunpack.c.l.b16 %v386
    %v657 = vunpack.c.l.b16 %v387
    %v658 = vunpack.c.l.b16 %v388
    %v659 = vunpack.c.l.b16 %v389
    %v660 = vunpack.c.l.b16 %v390
    %v661 = vunpack.c.l.b16 %v391
    %v662 = vunpack.c.l.b16 %v392
    %v663 = vunpack.c.l.b16 %v393
    %v664 = vunpack.c.l.b16 %v394
    %v665 = vunpack.c.l.b16 %v395
    %v666 = vunpack.c.l.b16 %v396
    %v667 = vunpack.c.l.b16 %v397
    %v668 = vunpack.c.l.b16 %v398
    %v669 = vunpack.c.l.b16 %v399
    %v670 = vunpack.c.l.b16 %v400
    %v671 = vunpack.c.l.b16 %v401
    %v672 = vunpack.c.l.b16 %v402
    %v673 = vunpack.c.l.b16 %v403
    %v674 = vunpack.c.l.b16 %v404
    %v675 = vunpack.c.l.b16 %v405
    %v676 = vunpack.c.l.b16 %v406
    %v677 = vunpack.c.l.b16 %v407
    %v678 = vunpack.c.l.b16 %v408
    %v679 = vunpack.c.l.b16 %v409
    %v680 = vunpack.c.l.b16 %v410
    %v681 = vunpack.c.l.b16 %v411
    %v682 = vunpack.c.l.b16 %v412
    %v683 = vunpack.c.l.b16 %v413
    %v684 = vunpack.c.l.b16 %v414
    %v685 = vunpack.c.l.b16 %v415
    %v686 = vunpack.c.l.b16 %v416
    %v687 = vunpack.c.l.b16 %v417
    %v688 = vunpack.c.l.b16 %v418
    %v689 = vunpack.c.l.b16 %v419
    %v690 = vunpack.c.l.b16 %v420
    %v691 = vunpack.c.l.b16 %v421
    %v692 = vunpack.c.l.b16 %v422
    %v693 = vunpack.c.l.b16 %v423
    %v694 = vunpack.c.l.b16 %v424
    %v695 = vunpack.c.l.b16 %v425
    %v696 = vunpack.c.l.b16 %v426
    %v697 = vunpack.c.l.b16 %v427
    %v698 = vunpack.c.l.b16 %v428
    %v699 = vunpack.c.l.b16 %v429
    %v700 = vunpack.c.l.b16 %v430
    %v701 = vunpack.c.l.b16 %v431
    %v702 = vunpack.c.l.b16 %v432
    %v703 = vunpack.c.l.b16 %v433
    %v704 = vunpack.c.l.b16 %v434
    %v705 = vunpack.c.l.b16 %v435
    %v706 = vunpack.c.l.b16 %v436
    %v707 = vunpack.c.l.b16 %v437
    %v708 = vunpack.c.l.b16 %v438
    %v709 = vunpack.c.l.b16 %v439
    %v710 = vunpack.c.l.b16 %v440
    %v711 = vunpack.c.l.b16 %v441
    %v712 = vunpack.c.l.b16 %v442
    %v713 = vunpack.c.l.b16 %v443
    %v714 = vunpack.c.l.b16 %v444
    %v715 = vunpack.c.l.b16 %v445
    %v716 = vunpack.c.l.b16 %v446
    %v717 = vunpack.c.l.b16 %v447
    %v718 = vunpack.c.l.b16 %v448
    %v719 = vunpack.c.l.b16 %v449
    %v720 = vunpack.c.l.b16 %v450
    %v721 = vunpack.c.l.b16 %v451
    %v722 = vunpack.c.l.b16 %v452
    %v723 = vunpack.c.l.b16 %v453
    %v724 = vunpack.c.l.b16 %v454
    %v725 = vunpack.c.l.b16 %v455
    %v726 = vunpack.c.l.b16 %v456
    %v727 = vunpack.c.l.b16 %v457
    %v728 = vunpack.c.l.b16 %v458
    %v729 = vunpack.c.l.b16 %v459
    %v730 = vunpack.c.l.b16 %v460
    %v731 = vunpack.c.l.b16 %v461
    %v732 = vunpack.c.l.b16 %v462
    %v733 = vunpack.c.l.b16 %v463
    %v734 = vunpack.c.l.b16 %v464
    %v735 = vunpack.c.l.b16 %v465
    %v736 = vunpack.c.l.b16 %v466
    %v737 = vunpack.c.l.b16 %v467
    %v738 = vunpack.c.l.b16 %v468
    %v739 = vunpack.c.l.b16 %v469
    %v740 = vunpack.c.l.b16 %v470
    %v741 = vunpack.c.l.b16 %v471
    %v742 = vunpack.c.l.b16 %v472
    %v743 = vunpack.c.l.b16 %v473
    %v744 = vunpack.c.l.b16 %v474
    %v745 = vunpack.c.l.b16 %v475
    %v746 = vunpack.c.l.b16 %v476
    %v747 = vunpack.c.l.b16 %v477
    %v748 = vunpack.c.l.b16 %v478
    %v749 = vunpack.c.l.b16 %v479
    %v750 = vunpack.c.l.b16 %v480
    %v751 = vunpack.c.l.b16 %v481
    %v752 = vunpack.c.l.b16 %v482
    %v753 = vunpack.c.l.b16 %v483
    %v754 = vunpack.c.l.b16 %v484
    %v755 = vunpack.c.l.b16 %v485
    %v756 = vpack.c.b16 %v629, %v628
    %v757 = vpack.c.b16 %v631, %v630
    %v758 = vpack.c.b16 %v633, %v632
    %v759 = vpack.c.b16 %v635, %v634
    %v760 = vpack.c.b16 %v637, %v636
    %v761 = vpack.c.b16 %v639, %v638
    %v762 = vpack.c.b16 %v641, %v640
    %v763 = vpack.c.b16 %v643, %v642
    %v764 = vpack.c.b16 %v645, %v644
    %v765 = vpack.c.b16 %v647, %v646
    %v766 = vpack.c.b16 %v649, %v648
    %v767 = vpack.c.b16 %v651, %v650
    %v768 = vpack.c.b16 %v653, %v652
    %v769 = vpack.c.b16 %v655, %v654
    %v770 = vpack.c.b16 %v657, %v656
    %v771 = vpack.c.b16 %v659, %v658
    %v772 = vpack.c.b16 %v661, %v660
    %v773 = vpack.c.b16 %v663, %v662
    %v774 = vpack.c.b16 %v665, %v664
    %v775 = vpack.c.b16 %v667, %v666
    %v776 = vpack.c.b16 %v669, %v668
    %v777 = vpack.c.b16 %v671, %v670
    %v778 = vpack.c.b16 %v673, %v672
    %v779 = vpack.c.b16 %v675, %v674
    %v780 = vpack.c.b16 %v677, %v676
    %v781 = vpack.c.b16 %v679, %v678
    %v782 = vpack.c.b16 %v681, %v680
    %v783 = vpack.c.b16 %v683, %v682
    %v784 = vpack.c.b16 %v685, %v684
    %v785 = vpack.c.b16 %v687, %v686
    %v786 = vpack.c.b16 %v689, %v688
    %v787 = vpack.c.b16 %v691, %v690
    %v788 = vpack.c.b16 %v693, %v692
    %v789 = vpack.c.b16 %v695, %v694
    %v790 = vpack.c.b16 %v697, %v696
    %v791 = vpack.c.b16 %v699, %v698
    %v792 = vpack.c.b16 %v701, %v700
    %v793 = vpack.c.b16 %v703, %v702
    %v794 = vpack.c.b16 %v705, %v704
    %v795 = vpack.c.b16 %v707, %v706
    %v796 = vpack.c.b16 %v709, %v708
    %v797 = vpack.c.b16 %v711, %v710
    %v798 = vpack.c.b16 %v713, %v712
    %v799 = vpack.c.b16 %v715, %v714
    %v800 = vpack.c.b16 %v717, %v716
    %v801 = vpack.c.b16 %v719, %v718
    %v802 = vpack.c.b16 %v721, %v720
    %v803 = vpack.c.b16 %v723, %v722
    %v804 = vpack.c.b16 %v725, %v724
    %v805 = vpack.c.b16 %v727, %v726
    %v806 = vpack.c.b16 %v729, %v728
    %v807 = vpack.c.b16 %v731, %v730
    %v808 = vpack.c.b16 %v733, %v732
    %v809 = vpack.c.b16 %v735, %v734
    %v810 = vpack.c.b16 %v737, %v736
    %v811 = vpack.c.b16 %v739, %v738
    %v812 = vpack.c.b16 %v741, %v740
    %v813 = vpack.c.b16 %v743, %v742
    %v814 = vpack.c.b16 %v745, %v744
    %v815 = vpack.c.b16 %v747, %v746
    %v816 = vpack.c.b16 %v749, %v748
    %v817 = vpack.c.b16 %v751, %v750
    %v818 = vpack.c.b16 %v753, %v752
    %v819 = vpack.c.b16 %v755, %v754
    %884 = vmatprep.subr.bf16.mxu0 0
    %885 = vmatpush1.bf16.msra.mxu0 %v763
    %886 = vmatprep.subr.bf16.mxu0 0
    %887 = vmatpush1.bf16.msra.mxu0 %v762
    %888 = vmatprep.subr.bf16.mxu0 0
    %889 = vmatpush1.bf16.msra.mxu0 %v761
    %890 = vmatprep.subr.bf16.mxu0 0
    %891 = vmatpush1.bf16.msra.mxu0 %v760
    %892 = vmatprep.subr.bf16.mxu0 0
    %893 = vmatpush1.bf16.msra.mxu0 %v759
    %894 = vmatprep.subr.bf16.mxu0 0
    %895 = vmatpush1.bf16.msra.mxu0 %v758
    %896 = vmatprep.subr.bf16.mxu0 0
    %897 = vmatpush1.bf16.msra.mxu0 %v757
    %898 = vmatprep.subr.bf16.mxu0 0
    %899 = vmatpush1.bf16.msra.mxu0 %v756
    %900 = vmatprep.subr.bf16.mxu0 0
    %901 = vmatpush2.bf16.msra.mxu0 %v771
    %902 = vmatprep.subr.bf16.mxu0 0
    %903 = vmatpush2.bf16.msra.mxu0 %v770
    %904 = vmatprep.subr.bf16.mxu0 0
    %905 = vmatpush2.bf16.msra.mxu0 %v769
    %906 = vmatprep.subr.bf16.mxu0 0
    %907 = vmatpush2.bf16.msra.mxu0 %v768
    %908 = vmatprep.subr.bf16.mxu0 0
    %909 = vmatpush2.bf16.msra.mxu0 %v767
    %910 = vmatprep.subr.bf16.mxu0 0
    %911 = vmatpush2.bf16.msra.mxu0 %v766
    %912 = vmatprep.subr.bf16.mxu0 0
    %913 = vmatpush2.bf16.msra.mxu0 %v765
    %914 = vmatprep.subr.bf16.mxu0 0
    %915 = vmatpush2.bf16.msra.mxu0 %v764
    %916 = vmatprep.mubr.bf16.mxu0 %v351
    %917 = vmatmul.mubr.bf16.gmra.mxu0 %v350
    %v918 = vpop.f32.mrf.mxu0
    %v919 = vadd.f32 %v499, %v918
    %v920 = vpop.f32.mrf.mxu0
    %v921 = vpop.f32.mrf.mxu0
    %v922 = vpop.f32.mrf.mxu0
    %923 = vdwg.mxu0
    %924 = vmatprep.subr.bf16.mxu0 0
    %925 = vmatpush1.bf16.msra.mxu0 %v779
    %926 = vmatprep.subr.bf16.mxu0 0
    %927 = vmatpush1.bf16.msra.mxu0 %v778
    %928 = vmatprep.subr.bf16.mxu0 0
    %929 = vmatpush1.bf16.msra.mxu0 %v777
    %930 = vmatprep.subr.bf16.mxu0 0
    %931 = vmatpush1.bf16.msra.mxu0 %v776
    %932 = vmatprep.subr.bf16.mxu0 0
    %933 = vmatpush1.bf16.msra.mxu0 %v775
    %934 = vmatprep.subr.bf16.mxu0 0
    %935 = vmatpush1.bf16.msra.mxu0 %v774
    %936 = vmatprep.subr.bf16.mxu0 0
    %937 = vmatpush1.bf16.msra.mxu0 %v773
    %938 = vmatprep.subr.bf16.mxu0 0
    %939 = vmatpush1.bf16.msra.mxu0 %v772
    %940 = vmatprep.subr.bf16.mxu0 0
    %941 = vmatpush2.bf16.msra.mxu0 %v787
    %942 = vmatprep.subr.bf16.mxu0 0
    %943 = vmatpush2.bf16.msra.mxu0 %v786
    %944 = vmatprep.subr.bf16.mxu0 0
    %945 = vmatpush2.bf16.msra.mxu0 %v785
    %946 = vmatprep.subr.bf16.mxu0 0
    %947 = vmatpush2.bf16.msra.mxu0 %v784
    %948 = vmatprep.subr.bf16.mxu0 0
    %949 = vmatpush2.bf16.msra.mxu0 %v783
    %950 = vmatprep.subr.bf16.mxu0 0
    %951 = vmatpush2.bf16.msra.mxu0 %v782
    %952 = vmatprep.subr.bf16.mxu0 0
    %953 = vmatpush2.bf16.msra.mxu0 %v781
    %954 = vmatprep.subr.bf16.mxu0 0
    %955 = vmatpush2.bf16.msra.mxu0 %v780
    %956 = vmatprep.mubr.bf16.mxu0 %v353
    %957 = vmatmul.mubr.bf16.gmra.mxu0 %v352
    %v958 = vpop.f32.mrf.mxu0
    %v959 = vadd.f32 %v919, %v958
    %v960 = vpop.f32.mrf.mxu0
    %v961 = vpop.f32.mrf.mxu0
    %v962 = vpop.f32.mrf.mxu0
    %963 = vdwg.mxu0
    %964 = vmatprep.subr.bf16.mxu0 0
    %965 = vmatpush1.bf16.msra.mxu0 %v795
    %966 = vmatprep.subr.bf16.mxu0 0
    %967 = vmatpush1.bf16.msra.mxu0 %v794
    %968 = vmatprep.subr.bf16.mxu0 0
    %969 = vmatpush1.bf16.msra.mxu0 %v793
    %970 = vmatprep.subr.bf16.mxu0 0
    %971 = vmatpush1.bf16.msra.mxu0 %v792
    %972 = vmatprep.subr.bf16.mxu0 0
    %973 = vmatpush1.bf16.msra.mxu0 %v791
    %974 = vmatprep.subr.bf16.mxu0 0
    %975 = vmatpush1.bf16.msra.mxu0 %v790
    %976 = vmatprep.subr.bf16.mxu0 0
    %977 = vmatpush1.bf16.msra.mxu0 %v789
    %978 = vmatprep.subr.bf16.mxu0 0
    %979 = vmatpush1.bf16.msra.mxu0 %v788
    %980 = vmatprep.subr.bf16.mxu0 0
    %981 = vmatpush2.bf16.msra.mxu0 %v803
    %982 = vmatprep.subr.bf16.mxu0 0
    %983 = vmatpush2.bf16.msra.mxu0 %v802
    %984 = vmatprep.subr.bf16.mxu0 0
    %985 = vmatpush2.bf16.msra.mxu0 %v801
    %986 = vmatprep.subr.bf16.mxu0 0
    %987 = vmatpush2.bf16.msra.mxu0 %v800
    %988 = vmatprep.subr.bf16.mxu0 0
    %989 = vmatpush2.bf16.msra.mxu0 %v799
    %990 = vmatprep.subr.bf16.mxu0 0
    %991 = vmatpush2.bf16.msra.mxu0 %v798
    %992 = vmatprep.subr.bf16.mxu0 0
    %993 = vmatpush2.bf16.msra.mxu0 %v797
    %994 = vmatprep.subr.bf16.mxu0 0
    %995 = vmatpush2.bf16.msra.mxu0 %v796
    %996 = vmatprep.mubr.bf16.mxu0 %v355
    %997 = vmatmul.mubr.bf16.gmra.mxu0 %v354
    %v998 = vpop.f32.mrf.mxu0
    %v999 = vadd.f32 %v959, %v998
    %v1000 = vpop.f32.mrf.mxu0
    %v1001 = vpop.f32.mrf.mxu0
    %v1002 = vpop.f32.mrf.mxu0
    %1003 = vdwg.mxu0
    %1004 = vmatprep.subr.bf16.mxu0 0
    %1005 = vmatpush1.bf16.msra.mxu0 %v811
    %1006 = vmatprep.subr.bf16.mxu0 0
    %1007 = vmatpush1.bf16.msra.mxu0 %v810
    %1008 = vmatprep.subr.bf16.mxu0 0
    %1009 = vmatpush1.bf16.msra.mxu0 %v809
    %1010 = vmatprep.subr.bf16.mxu0 0
    %1011 = vmatpush1.bf16.msra.mxu0 %v808
    %1012 = vmatprep.subr.bf16.mxu0 0
    %1013 = vmatpush1.bf16.msra.mxu0 %v807
    %1014 = vmatprep.subr.bf16.mxu0 0
    %1015 = vmatpush1.bf16.msra.mxu0 %v806
    %1016 = vmatprep.subr.bf16.mxu0 0
    %1017 = vmatpush1.bf16.msra.mxu0 %v805
    %1018 = vmatprep.subr.bf16.mxu0 0
    %1019 = vmatpush1.bf16.msra.mxu0 %v804
    %1020 = vmatprep.subr.bf16.mxu0 0
    %1021 = vmatpush2.bf16.msra.mxu0 %v819
    %1022 = vmatprep.subr.bf16.mxu0 0
    %1023 = vmatpush2.bf16.msra.mxu0 %v818
    %1024 = vmatprep.subr.bf16.mxu0 0
    %1025 = vmatpush2.bf16.msra.mxu0 %v817
    %1026 = vmatprep.subr.bf16.mxu0 0
    %1027 = vmatpush2.bf16.msra.mxu0 %v816
    %1028 = vmatprep.subr.bf16.mxu0 0
    %1029 = vmatpush2.bf16.msra.mxu0 %v815
    %1030 = vmatprep.subr.bf16.mxu0 0
    %1031 = vmatpush2.bf16.msra.mxu0 %v814
    %1032 = vmatprep.subr.bf16.mxu0 0
    %1033 = vmatpush2.bf16.msra.mxu0 %v813
    %1034 = vmatprep.subr.bf16.mxu0 0
    %1035 = vmatpush2.bf16.msra.mxu0 %v812
    %1036 = vmatprep.mubr.bf16.mxu0 %v357
    %1037 = vmatmul.mubr.bf16.gmra.mxu0 %v356
    %v1038 = vpop.f32.mrf.mxu0
    %v1039 = vadd.f32 %v999, %v1038
    %v1040 = vpop.f32.mrf.mxu0
    %v1041 = vpop.f32.mrf.mxu0
    %v1042 = vpop.f32.mrf.mxu0
    %1043 = vdwg.mxu0
    %v1044 = vld [vmem:[%s6] sm:$0x1]
    %v1046 = vlaneseq
    %v1047 = vshrl.u32 %v1046, 7
    %v1048 = vsub.s32 0, %v1047
    %v1049 = vrot.slane %v1044, %v1048
    %v1051 = vadd.f32 %v1039, %v1049
    %1052 = vmax.xlane.f32.xlu0 %v1051
    %v1053 = vpop.xlane.xlu0 %1052
    %v1054 = vsub.f32 %v1051, %v1053
    %v1055 = vmul.f32 %v1054, 1.442695
    %v1056 = vpow.pop %v1055
    %1057 = vadd.xlane.f32.xlu0 %v1056
    %v1058 = vpop.xlane.xlu0 %1057
    %v1059 = vrcp.pop %v1058
    %v1060 = vmul.f32 %v1056, %v1059
    %1061 = vst [vmem:[#allocation8] sm:$0xff] %v1060
    // Predicated region
    $region42: #{tpu_custom_call.1} parent=1 // pred_check
      _
    $region43: #{tpu_custom_call.1} parent=1 // pred_check_branch
      %1063 = sbr.rel (0) target = $region45
    $region44: #{tpu_custom_call.1} parent=1 // pred_region
      %s1065 = ssub.s32 128, 32
      %1066 = vsyncadd [#allocation4], %s1065
      %s1067 = sshll.u32 [#allocation8], 4
      %s1068 = int_to_ptr.vmem [resolvable:$true] %s1067
      %1073 = dma.vmem_to_hbm [thread:$0]  %s1068, 32, %s7, [#allocation4], 32, 32, 2
    $region45: #{tpu_custom_call.1} parent=1 // pred_fallthru
      _
    // Predicated region
    $region46: #{tpu_custom_call.1} parent=1 // pred_check
      _
    $region47: #{tpu_custom_call.1} parent=1 // pred_check_branch
      %1075 = sbr.rel (0) target = $region49
    $region48: #{tpu_custom_call.1} parent=1 // pred_region
      %1076 = dma.done [#allocation4], 128
    $region49: #{tpu_custom_call.1} parent=1 // pred_fallthru
      _
    %1077 = vsyncpa [#allocation3], 1
    %1078 = vsyncpa [#allocation6], 1
    %1079 = vsyncpa [#allocation4], 1

</llo_original>
